<compile_context>
chip_gen: v7x
topology: tpu7x:2x2x1
jax: 0.10.0
libtpu: 0.0.40
codegen_flags: <defaults>
</compile_context>

<pallas_src>
import functools

import jax
import jax.numpy as jnp
from jax.experimental import pallas as pl
from jax.experimental.pallas import tpu as pltpu

ROW_TILE = 512                   # rows (N*H*W) per grid step for 1x1-conv matmuls
VMEM_LIMIT = 48 * 1024 * 1024    # safe on v5e/v6e (128M) and v7x (64M physical/TC)


def _sigmoid(x):
    # exact sigmoid via tanh: numerically stable, runs on the EUP slot.
    return 0.5 * jnp.tanh(0.5 * x) + 0.5


def _silu_from_half(h):
    # h = 0.5 * z with the 0.5 folded into weights/bias; silu(z) = h*tanh(h) + h
    return h * jnp.tanh(h) + h


# ----------------------------------------------------------------------------
# Kernel 1: row-tiled matmul (BN scale + SiLU-0.5 folded into w) + bias + SiLU
#           (stem conv via im2col, expand 1x1 convs)
# ----------------------------------------------------------------------------
def _mm_bias_silu_kernel(a_ref, w_ref, b_ref, o_ref):
    h = jnp.dot(a_ref[...], w_ref[...], preferred_element_type=jnp.float32)
    h = h + b_ref[...]
    o_ref[...] = _silu_from_half(h).astype(jnp.bfloat16)


def matmul_bias_silu(a, w, bias):
    """out = silu(2*(a@w + bias)); a:(M,K) bf16, w:(K,Cout) bf16 (0.5*scale folded)."""
    m, kd = a.shape
    cout = w.shape[1]
    tm = m if m <= ROW_TILE else ROW_TILE
    return pl.pallas_call(
        _mm_bias_silu_kernel,
        out_shape=jax.ShapeDtypeStruct((m, cout), jnp.bfloat16),
        grid=(pl.cdiv(m, tm),),
        in_specs=[
            pl.BlockSpec((tm, kd), lambda i: (i, 0)),
            pl.BlockSpec((kd, cout), lambda i: (0, 0)),
            pl.BlockSpec((1, cout), lambda i: (0, 0)),
        ],
        out_specs=pl.BlockSpec((tm, cout), lambda i: (i, 0)),
        compiler_params=pltpu.CompilerParams(
            dimension_semantics=("parallel",), vmem_limit_bytes=VMEM_LIMIT),
    )(a, w, bias)


# ----------------------------------------------------------------------------
# Kernel 2: depthwise conv (+ folded BN, SiLU) fused with SE squeeze + FCs.
#   One grid step per sample; the input is the phase-decomposed padded
#   activation (no K^2 im2col in HBM).  Taps are formed with static in-VMEM
#   slices; SE pool / FCs / sigmoid gate are computed in the same step.
# ----------------------------------------------------------------------------
def _dw_se_kernel(x_ref, w_ref, b_ref, w1_ref, b1_ref, w2_ref, b2_ref,
                  act_ref, gate_ref, *, K, stride, ho, wo, hq, inv_hw):
    c = act_ref.shape[-1]
    s = stride
    xv = x_ref[0].astype(jnp.float32)              # (s*s*hq, wq, c), upcast once
    acc = None
    for kh in range(K):
        for kw in range(K):
            p = (kh % s) * s + (kw % s)
            a = p * hq + kh // s
            b = kw // s
            tap = xv[a:a + ho, b:b + wo, :]        # (ho, wo, c) static slice
            wk = w_ref[kh * K + kw].reshape(1, 1, c)
            t = tap * wk
            acc = t if acc is None else acc + t
    h = acc + b_ref[...].reshape(1, 1, c)
    y = _silu_from_half(h)                         # (ho, wo, c) f32 activation
    act_ref[0] = y.astype(jnp.bfloat16)

    pooled = jnp.sum(jnp.sum(y, axis=0), axis=0, keepdims=True) * inv_hw  # (1,c)
    hid = jnp.dot(pooled.astype(jnp.bfloat16), w1_ref[...],
                  preferred_element_type=jnp.float32) + b1_ref[...]
    hid = hid * _sigmoid(hid)                      # SiLU on SE hidden
    g = jnp.dot(hid.astype(jnp.bfloat16), w2_ref[...],
                preferred_element_type=jnp.float32) + b2_ref[...]
    gate_ref[0] = _sigmoid(g)                      # (1, c) f32


def depthwise_se(phases, dw_w, dw_bias, w1, b1, w2, b2, *, K, stride, ho, wo, hq):
    """phases: (N, s*s*Hq, Wq, C) bf16 -> (act (N,Ho,Wo,C) bf16, gate (N,1,C) f32)."""
    n, ph, wq, c = phases.shape
    cr = w1.shape[1]
    kk = K * K
    kernel = functools.partial(_dw_se_kernel, K=K, stride=stride, ho=ho, wo=wo,
                               hq=hq, inv_hw=1.0 / float(ho * wo))
    return pl.pallas_call(
        kernel,
        out_shape=(jax.ShapeDtypeStruct((n, ho, wo, c), jnp.bfloat16),
                   jax.ShapeDtypeStruct((n, 1, c), jnp.float32)),
        grid=(n,),
        in_specs=[
            pl.BlockSpec((1, ph, wq, c), lambda i: (i, 0, 0, 0)),
            pl.BlockSpec((kk, 1, c), lambda i: (0, 0, 0)),
            pl.BlockSpec((1, c), lambda i: (0, 0)),
            pl.BlockSpec((c, cr), lambda i: (0, 0)),
            pl.BlockSpec((1, cr), lambda i: (0, 0)),
            pl.BlockSpec((cr, c), lambda i: (0, 0)),
            pl.BlockSpec((1, c), lambda i: (0, 0)),
        ],
        out_specs=(pl.BlockSpec((1, ho, wo, c), lambda i: (i, 0, 0, 0)),
                   pl.BlockSpec((1, 1, c), lambda i: (i, 0, 0))),
        compiler_params=pltpu.CompilerParams(
            dimension_semantics=("parallel",), vmem_limit_bytes=VMEM_LIMIT),
    )(phases, dw_w, dw_bias, w1, b1, w2, b2)


# ----------------------------------------------------------------------------
# Kernel 3: projection 1x1 conv (BN scale folded into w) with the SE gate
#           applied in bf16 to its input rows, bias, optional residual add.
# ----------------------------------------------------------------------------
def project_gate_residual(act, gate, w, bias, residual=None):
    n, hw, cexp = act.shape
    cout = w.shape[1]
    thw = hw if hw <= ROW_TILE else ROW_TILE
    t = pl.cdiv(hw, thw)
    has_res = residual is not None

    def kernel(*refs):
        if has_res:
            x_ref, g_ref, w_ref, b_ref, r_ref, o_ref = refs
        else:
            x_ref, g_ref, w_ref, b_ref, o_ref = refs
        g = g_ref[0].astype(jnp.bfloat16)            # (1, cexp), single upcast
        a = x_ref[0] * g                             # bf16 gating
        y = jnp.dot(a, w_ref[...], preferred_element_type=jnp.float32)
        y = y + b_ref[...]
        if has_res:
            y = y + r_ref[0].astype(jnp.float32)
        o_ref[0] = y.astype(jnp.bfloat16)

    in_specs = [
        pl.BlockSpec((1, thw, cexp), lambda i, j: (i, j, 0)),
        pl.BlockSpec((1, 1, cexp), lambda i, j: (i, 0, 0)),
        pl.BlockSpec((cexp, cout), lambda i, j: (0, 0)),
        pl.BlockSpec((1, cout), lambda i, j: (0, 0)),
    ]
    inputs = [act, gate, w, bias]
    if has_res:
        in_specs.append(pl.BlockSpec((1, thw, cout), lambda i, j: (i, j, 0)))
        inputs.append(residual)
    return pl.pallas_call(
        kernel,
        out_shape=jax.ShapeDtypeStruct((n, hw, cout), jnp.bfloat16),
        grid=(n, t),
        in_specs=in_specs,
        out_specs=pl.BlockSpec((1, thw, cout), lambda i, j: (i, j, 0)),
        compiler_params=pltpu.CompilerParams(
            dimension_semantics=("parallel", "parallel"),
            vmem_limit_bytes=VMEM_LIMIT),
    )(*inputs)


# ----------------------------------------------------------------------------
# Kernel 4: head = top 1x1 conv (folded BN) + SiLU + global avg pool + Linear
#           + Sigmoid (Dropout identity at inference), one grid step per sample.
# ----------------------------------------------------------------------------
def _head_kernel(x_ref, w_ref, b_ref, fw_ref, fb_ref, o_ref, *, inv_hw):
    h = jnp.dot(x_ref[0], w_ref[...], preferred_element_type=jnp.float32)
    h = h + b_ref[...]
    y = _silu_from_half(h)                              # (HW, 1280) f32
    pooled = jnp.sum(y, axis=0, keepdims=True) * inv_hw  # (1, 1280)
    logits = jnp.dot(pooled, fw_ref[...],
                     preferred_element_type=jnp.float32) + fb_ref[...]
    o_ref[0] = _sigmoid(logits)


def head_pool_fc_sigmoid(xf, w, bias, fw, fb):
    n, hw, cin = xf.shape
    cmid = w.shape[1]
    ncls = fw.shape[1]
    kernel = functools.partial(_head_kernel, inv_hw=1.0 / float(hw))
    return pl.pallas_call(
        kernel,
        out_shape=jax.ShapeDtypeStruct((n, 1, ncls), jnp.float32),
        grid=(n,),
        in_specs=[
            pl.BlockSpec((1, hw, cin), lambda i: (i, 0, 0)),
            pl.BlockSpec((cin, cmid), lambda i: (0, 0)),
            pl.BlockSpec((1, cmid), lambda i: (0, 0)),
            pl.BlockSpec((cmid, ncls), lambda i: (0, 0)),
            pl.BlockSpec((1, ncls), lambda i: (0, 0)),
        ],
        out_specs=pl.BlockSpec((1, 1, ncls), lambda i: (i, 0, 0)),
        compiler_params=pltpu.CompilerParams(
            dimension_semantics=("parallel",), vmem_limit_bytes=VMEM_LIMIT),
    )(xf, w, bias, fw, fb)


# ----------------------------------------------------------------------------
# plain-JAX glue: stem im2col (3-channel input, negligible inflation) and the
# phase decomposition for the depthwise stage (halo padding only, no K^2 blowup)
# ----------------------------------------------------------------------------
def extract_patches_im2col(x, K, stride, pad):
    """x: (N,H,W,C) -> (N*Ho*Wo, K*K*C) for the dense stem conv."""
    n, h, w, c = x.shape
    ho = (h + 2 * pad - K) // stride + 1
    wo = (w + 2 * pad - K) // stride + 1
    xp = jnp.pad(x, ((0, 0), (pad, pad), (pad, pad), (0, 0)))
    cols = [xp[:, kh::stride, kw::stride, :][:, :ho, :wo, :]
            for kh in range(K) for kw in range(K)]
    p = jnp.stack(cols, axis=3)                        # (N,Ho,Wo,KK,C)
    return p.reshape(n * ho * wo, K * K * c), ho, wo


def extract_phases(x, K, stride):
    """x: (N,H,W,C) -> ((N, s*s*Hq, Wq, C), ho, wo, hq).

    Only the conv halo (and stride-phase ragged rows) is materialized; total
    HBM size ~= the activation itself.  Tap (kh,kw) of output pixel (i,j) is
    phases[(kh%s)*s + kw%s][i + kh//s, j + kw//s]."""
    n, h, w, c = x.shape
    s = stride
    pad = (K - 1) // 2
    ho = (h + 2 * pad - K) // s + 1
    wo = (w + 2 * pad - K) // s + 1
    hp, wp = h + 2 * pad, w + 2 * pad
    hq, wq = -(-hp // s), -(-wp // s)
    xp = jnp.pad(x, ((0, 0), (pad, pad + hq * s - hp),
                     (pad, pad + wq * s - wp), (0, 0)))
    if s == 1:
        phases = xp                                    # (N, hq, wq, C)
    else:
        cols = [xp[:, r::s, q::s, :] for r in range(s) for q in range(s)]
        phases = jnp.stack(cols, axis=1).reshape(n, s * s * hq, wq, c)
    return phases, ho, wo, hq


# ----------------------------------------------------------------------------
# EfficientNet-B0 architecture
# (expand_ratio, kernel, stride, in_ch, out_ch, num_layers)
# ----------------------------------------------------------------------------
MBCONV_CONFIGS = [
    (1, 3, 1, 32, 16, 1),
    (6, 3, 2, 16, 24, 2),
    (6, 5, 2, 24, 40, 2),
    (6, 3, 2, 40, 80, 3),
    (6, 5, 1, 80, 112, 3),
    (6, 5, 2, 112, 192, 4),
    (6, 3, 1, 192, 320, 1),
]


def init_params(key, num_classes):
    keys = iter(jax.random.split(key, 2048))

    def nk():
        return next(keys)

    def bn_fold(c):
        gamma = 1.0 + 0.1 * jax.random.normal(nk(), (c,), jnp.float32)
        beta = 0.1 * jax.random.normal(nk(), (c,), jnp.float32)
        mean = 0.1 * jax.random.normal(nk(), (c,), jnp.float32)
        var = 1.0 + 0.1 * jax.random.uniform(nk(), (c,), jnp.float32)
        scale = gamma / jnp.sqrt(var + 1e-3)
        bias = beta - mean * scale
        return scale, bias

    def conv_bn_silu(cin, cout):
        # BN scale and the 0.5 of the tanh-form SiLU folded into the bf16 weight.
        w = jax.random.normal(nk(), (cin, cout), jnp.float32) * (2.0 / cin) ** 0.5
        scale, bias = bn_fold(cout)
        return ((w * (0.5 * scale)[None, :]).astype(jnp.bfloat16),
                (0.5 * bias).reshape(1, cout))

    def conv_bn(cin, cout):
        # projection conv: BN scale folded, no activation -> no 0.5 fold.
        w = jax.random.normal(nk(), (cin, cout), jnp.float32) * (2.0 / cin) ** 0.5
        scale, bias = bn_fold(cout)
        return (w * scale[None, :]).astype(jnp.bfloat16), bias.reshape(1, cout)

    def dw_bn_silu(K, c):
        w = jax.random.normal(nk(), (K * K, c), jnp.float32) * (2.0 / (K * K)) ** 0.5
        scale, bias = bn_fold(c)
        return ((w * (0.5 * scale)[None, :]).reshape(K * K, 1, c),   # f32
                (0.5 * bias).reshape(1, c))

    def lin(cin, cout, w_dtype=jnp.float32):
        w = jax.random.normal(nk(), (cin, cout), jnp.float32) * (1.0 / cin) ** 0.5
        b = 0.01 * jax.random.normal(nk(), (cout,), jnp.float32)
        return w.astype(w_dtype), b.reshape(1, cout)

    params = {"num_classes": num_classes}
    # stem: Conv 3x3 s2, 3->32, BN, SiLU; im2col contraction dim padded 27 -> 32
    ws, bs = conv_bn_silu(27, 32)
    params["stem_w"] = jnp.pad(ws, ((0, 5), (0, 0)))
    params["stem_bias"] = bs

    blocks = []
    for (er, K, stride, cin, cout, nl) in MBCONV_CONFIGS:
        for li in range(nl):
            bin_ch = cin if li == 0 else cout
            bstride = stride if li == 0 else 1
            exp_ch = bin_ch * er
            sq = max(1, bin_ch // 4)
            bp = {"stride": bstride, "in": bin_ch, "out": cout, "k": K}
            if er != 1:
                bp["expand_w"], bp["expand_bias"] = conv_bn_silu(bin_ch, exp_ch)
            bp["dw_w"], bp["dw_bias"] = dw_bn_silu(K, exp_ch)
            bp["se_w1"], bp["se_b1"] = lin(exp_ch, sq, jnp.bfloat16)
            bp["se_w2"], bp["se_b2"] = lin(sq, exp_ch, jnp.bfloat16)
            bp["proj_w"], bp["proj_bias"] = conv_bn(exp_ch, cout)
            blocks.append(bp)
    params["blocks"] = blocks

    # final features conv 1x1 320->1280 + BN + SiLU, and the replaced classifier
    params["top_w"], params["top_bias"] = conv_bn_silu(320, 1280)
    params["fc_w"], params["fc_b"] = lin(1280, num_classes, jnp.float32)
    return params


def mbconv_block(x, bp):
    n, h, w_, c = x.shape
    inp = x
    if "expand_w" in bp:
        y = matmul_bias_silu(x.reshape(n * h * w_, c),
                             bp["expand_w"], bp["expand_bias"])
        x = y.reshape(n, h, w_, y.shape[-1])
    phases, ho, wo, hq = extract_phases(x, bp["k"], bp["stride"])
    act, gate = depthwise_se(phases, bp["dw_w"], bp["dw_bias"],
                             bp["se_w1"], bp["se_b1"], bp["se_w2"], bp["se_b2"],
                             K=bp["k"], stride=bp["stride"], ho=ho, wo=wo, hq=hq)
    cexp = act.shape[-1]
    use_res = (bp["stride"] == 1 and bp["in"] == bp["out"])
    res = inp.reshape(n, h * w_, c) if use_res else None
    y = project_gate_residual(act.reshape(n, ho * wo, cexp), gate,
                              bp["proj_w"], bp["proj_bias"], res)
    return y.reshape(n, ho, wo, y.shape[-1])


def classifier_efficient_forward(params, x_nchw):
    """Forward of ClassifierEfficient: efficientnet_b0(x) -> sigmoid."""
    x = jnp.transpose(x_nchw, (0, 2, 3, 1)).astype(jnp.float32)   # NCHW -> NHWC
    n = x.shape[0]
    a, ho, wo = extract_patches_im2col(x, 3, 2, 1)
    a = jnp.pad(a, ((0, 0), (0, 32 - a.shape[1]))).astype(jnp.bfloat16)
    y = matmul_bias_silu(a, params["stem_w"], params["stem_bias"])
    x = y.reshape(n, ho, wo, y.shape[-1])
    for bp in params["blocks"]:
        x = mbconv_block(x, bp)
    nb, h, w_, c = x.shape
    out = head_pool_fc_sigmoid(x.reshape(nb, h * w_, c),
                               params["top_w"], params["top_bias"],
                               params["fc_w"], params["fc_b"])
    return out[:, 0, :]


if __name__ == "__main__":
    num_classes = 5
    key = jax.random.PRNGKey(0)
    pkey, xkey = jax.random.split(key)
    params = init_params(pkey, num_classes)

    # small input consistent with the module: NCHW, 3 channels
    x = jax.random.normal(xkey, (2, 3, 32, 32), jnp.float32)

    out = classifier_efficient_forward(params, x)
    out = jax.block_until_ready(out)

    assert out.shape == (2, num_classes), out.shape
    assert bool(jnp.all(jnp.isfinite(out)))
    assert bool(jnp.all((out >= 0.0) & (out <= 1.0)))
    print("KERNEL_OK")
</pallas_src>

<mosaic_0001>
module attributes {stable_mosaic.version = 11 : i64} {
  func.func @_mm_bias_silu_kernel(%arg0: i32, %arg1: memref<512x32xbf16, #tpu.memory_space<vmem>>, %arg2: memref<32x32xbf16, #tpu.memory_space<vmem>>, %arg3: memref<1x32xf32, #tpu.memory_space<vmem>>, %arg4: memref<512x32xbf16, #tpu.memory_space<vmem>>) attributes {dimension_semantics = [#tpu.dimension_semantics<parallel>], iteration_bounds = array<i64: 1>, scalar_prefetch = 0 : i64, scratch_operands = 0 : i64, tpu.core_type = #tpu.core_type<tc>, window_params = [{transform_indices = @transform_0, window_bounds = array<i64: 512, 32>}, {pipeline_mode = #tpu.pipeline_mode<synchronous>, transform_indices = @transform_1, window_bounds = array<i64: 32, 32>}, {pipeline_mode = #tpu.pipeline_mode<synchronous>, transform_indices = @transform_2, window_bounds = array<i64: 1, 32>}, {transform_indices = @transform_3, window_bounds = array<i64: 512, 32>}]} {
    %c0 = arith.constant 0 : index
    %c0_0 = arith.constant 0 : index
    %0 = vector.load %arg1[%c0, %c0_0] : memref<512x32xbf16, #tpu.memory_space<vmem>>, vector<512x32xbf16>
    %c0_1 = arith.constant 0 : index
    %c0_2 = arith.constant 0 : index
    %1 = vector.load %arg2[%c0_1, %c0_2] : memref<32x32xbf16, #tpu.memory_space<vmem>>, vector<32x32xbf16>
    %cst = arith.constant dense<0.000000e+00> : vector<512x32xf32>
    %2 = tpu.matmul %0, %1, %cst {dimension_numbers = #tpu.dot_dimension_numbers<[1], [0], [0], [1], [0, 0, 1, 1], [], []>} : vector<512x32xbf16>, vector<32x32xbf16>, vector<512x32xf32> -> vector<512x32xf32>
    %c0_3 = arith.constant 0 : index
    %c0_4 = arith.constant 0 : index
    %3 = vector.load %arg3[%c0_3, %c0_4] : memref<1x32xf32, #tpu.memory_space<vmem>>, vector<1x32xf32>
    %4 = vector.broadcast %3 : vector<1x32xf32> to vector<512x32xf32>
    %5 = arith.addf %2, %4 : vector<512x32xf32>
    %6 = math.tanh %5 : vector<512x32xf32>
    %7 = arith.mulf %5, %6 : vector<512x32xf32>
    %8 = arith.addf %7, %5 : vector<512x32xf32>
    %9 = arith.truncf %8 : vector<512x32xf32> to vector<512x32xbf16>
    %c0_5 = arith.constant 0 : index
    %c0_6 = arith.constant 0 : index
    %10 = vector.load %arg4[%c0_5, %c0_6] : memref<512x32xbf16, #tpu.memory_space<vmem>>, vector<512x32xbf16>
    tpu.vector_store %arg4[%c0_5, %c0_6], %9 {strides = array<i32>} : memref<512x32xbf16, #tpu.memory_space<vmem>>, vector<512x32xbf16>,
    return
  }
  func.func @transform_0(%arg0: i32) -> (i32, i32) {
    %c0_i32 = arith.constant 0 : i32
    %c0_i32_0 = arith.constant 0 : i32
    return %arg0, %c0_i32 : i32, i32
  }
  func.func @transform_1(%arg0: i32) -> (i32, i32) {
    %c0_i32 = arith.constant 0 : i32
    %c0_i32_0 = arith.constant 0 : i32
    %c0_i32_1 = arith.constant 0 : i32
    return %c0_i32, %c0_i32_0 : i32, i32
  }
  func.func @transform_2(%arg0: i32) -> (i32, i32) {
    %c0_i32 = arith.constant 0 : i32
    %c0_i32_0 = arith.constant 0 : i32
    %c0_i32_1 = arith.constant 0 : i32
    return %c0_i32, %c0_i32_0 : i32, i32
  }
  func.func @transform_3(%arg0: i32) -> (i32, i32) {
    %c0_i32 = arith.constant 0 : i32
    %c0_i32_0 = arith.constant 0 : i32
    return %arg0, %c0_i32 : i32, i32
  }
}

</mosaic_0001>

<llo_original>
// kernel: tpu_custom_call.1
$region0: #{tpu_custom_call.1}
  #allocation0 [shape = 'u32[]', space=smem, size = 0x4, offset = 0x4, fixed_abs, tag = 'smem constant byte address 0x4 - core index']
  #allocation1 [shape = 'u32[144,128]{1,0:T(1,128)}', space=vmem, size = 0x12000, scoped, tag = 'internal scratch']
  %s0 = inlined_call_operand.vmem [shape: bf16[512,32], index: 0, kind: input, shape index: {}]
  %s1 = inlined_call_operand.vmem [shape: bf16[32,32], index: 1, kind: input, shape index: {}]
  %s2 = inlined_call_operand.vmem [shape: f32[1,32], index: 2, kind: input, shape index: {}]
  %s3 = inlined_call_operand.vmem [shape: bf16[512,32], index: 3, kind: output, shape index: {}]
  %s4 = sld [smem:[#allocation0]]
  $region22: #{tpu_custom_call.1} parent=0
    _
  %s6 = ssub.s32 1, %s4
  %s7 = scalar_select 0, %s6, %s4
  // Predicated region
  $region2: #{tpu_custom_call.1} parent=0 // pred_check
    _
  $region3: #{tpu_custom_call.1} parent=0 // pred_check_branch
    %9 = sbr.rel (0) target = $region5
  $region4: #{tpu_custom_call.1} parent=0 // pred_region
    _
  $region5: #{tpu_custom_call.1} parent=0 // pred_fallthru
    _
  // Predicated region
  $region6: #{tpu_custom_call.1} parent=0 // pred_check
    _
  $region7: #{tpu_custom_call.1} parent=0 // pred_check_branch
    %11 = sbr.rel (0) target = $region9
  $region8: #{tpu_custom_call.1} parent=0 // pred_region
    _
  $region9: #{tpu_custom_call.1} parent=0 // pred_fallthru
    _
  // Predicated region
  $region10: #{tpu_custom_call.1} parent=0 // pred_check
    _
  $region11: #{tpu_custom_call.1} parent=0 // pred_check_branch
    %13 = sbr.rel (0) target = $region13
  $region12: #{tpu_custom_call.1} parent=0 // pred_region
    _
  $region13: #{tpu_custom_call.1} parent=0 // pred_fallthru
    _
  %v15 = vld [vmem:[%s0] sm:$0xf]
  %v16 = vld [vmem:[%s0 + $0x4] sm:$0xf]
  %v17 = vld [vmem:[%s0 + $0x8] sm:$0xf]
  %v18 = vld [vmem:[%s0 + $0xc] sm:$0xf]
  %v19 = vld [vmem:[%s0 + $0x10] sm:$0xf]
  %v20 = vld [vmem:[%s0 + $0x14] sm:$0xf]
  %v21 = vld [vmem:[%s0 + $0x18] sm:$0xf]
  %v22 = vld [vmem:[%s0 + $0x1c] sm:$0xf]
  %v23 = vld [vmem:[%s0 + $0x20] sm:$0xf]
  %v24 = vld [vmem:[%s0 + $0x24] sm:$0xf]
  %v25 = vld [vmem:[%s0 + $0x28] sm:$0xf]
  %v26 = vld [vmem:[%s0 + $0x2c] sm:$0xf]
  %v27 = vld [vmem:[%s0 + $0x30] sm:$0xf]
  %v28 = vld [vmem:[%s0 + $0x34] sm:$0xf]
  %v29 = vld [vmem:[%s0 + $0x38] sm:$0xf]
  %v30 = vld [vmem:[%s0 + $0x3c] sm:$0xf]
  %v31 = vld [vmem:[%s0 + $0x40] sm:$0xf]
  %v32 = vld [vmem:[%s0 + $0x44] sm:$0xf]
  %v33 = vld [vmem:[%s0 + $0x48] sm:$0xf]
  %v34 = vld [vmem:[%s0 + $0x4c] sm:$0xf]
  %v35 = vld [vmem:[%s0 + $0x50] sm:$0xf]
  %v36 = vld [vmem:[%s0 + $0x54] sm:$0xf]
  %v37 = vld [vmem:[%s0 + $0x58] sm:$0xf]
  %v38 = vld [vmem:[%s0 + $0x5c] sm:$0xf]
  %v39 = vld [vmem:[%s0 + $0x60] sm:$0xf]
  %v40 = vld [vmem:[%s0 + $0x64] sm:$0xf]
  %v41 = vld [vmem:[%s0 + $0x68] sm:$0xf]
  %v42 = vld [vmem:[%s0 + $0x6c] sm:$0xf]
  %v43 = vld [vmem:[%s0 + $0x70] sm:$0xf]
  %v44 = vld [vmem:[%s0 + $0x74] sm:$0xf]
  %v45 = vld [vmem:[%s0 + $0x78] sm:$0xf]
  %v46 = vld [vmem:[%s0 + $0x7c] sm:$0xf]
  %v47 = vld [vmem:[%s0 + $0x80] sm:$0xf]
  %v48 = vld [vmem:[%s0 + $0x84] sm:$0xf]
  %v49 = vld [vmem:[%s0 + $0x88] sm:$0xf]
  %v50 = vld [vmem:[%s0 + $0x8c] sm:$0xf]
  %v51 = vld [vmem:[%s0 + $0x90] sm:$0xf]
  %v52 = vld [vmem:[%s0 + $0x94] sm:$0xf]
  %v53 = vld [vmem:[%s0 + $0x98] sm:$0xf]
  %v54 = vld [vmem:[%s0 + $0x9c] sm:$0xf]
  %v55 = vld [vmem:[%s0 + $0xa0] sm:$0xf]
  %v56 = vld [vmem:[%s0 + $0xa4] sm:$0xf]
  %v57 = vld [vmem:[%s0 + $0xa8] sm:$0xf]
  %v58 = vld [vmem:[%s0 + $0xac] sm:$0xf]
  %v59 = vld [vmem:[%s0 + $0xb0] sm:$0xf]
  %v60 = vld [vmem:[%s0 + $0xb4] sm:$0xf]
  %v61 = vld [vmem:[%s0 + $0xb8] sm:$0xf]
  %v62 = vld [vmem:[%s0 + $0xbc] sm:$0xf]
  %v63 = vld [vmem:[%s0 + $0xc0] sm:$0xf]
  %v64 = vld [vmem:[%s0 + $0xc4] sm:$0xf]
  %v65 = vld [vmem:[%s0 + $0xc8] sm:$0xf]
  %v66 = vld [vmem:[%s0 + $0xcc] sm:$0xf]
  %v67 = vld [vmem:[%s0 + $0xd0] sm:$0xf]
  %v68 = vld [vmem:[%s0 + $0xd4] sm:$0xf]
  %v69 = vld [vmem:[%s0 + $0xd8] sm:$0xf]
  %v70 = vld [vmem:[%s0 + $0xdc] sm:$0xf]
  %v71 = vld [vmem:[%s0 + $0xe0] sm:$0xf]
  %v72 = vld [vmem:[%s0 + $0xe4] sm:$0xf]
  %v73 = vld [vmem:[%s0 + $0xe8] sm:$0xf]
  %v74 = vld [vmem:[%s0 + $0xec] sm:$0xf]
  %v75 = vld [vmem:[%s0 + $0xf0] sm:$0xf]
  %v76 = vld [vmem:[%s0 + $0xf4] sm:$0xf]
  %v77 = vld [vmem:[%s0 + $0xf8] sm:$0xf]
  %v78 = vld [vmem:[%s0 + $0xfc] sm:$0xf]
  %v79 = vld [vmem:[%s1] sm:$0xf]
  %v80 = vld [vmem:[%s1 + $0x4] sm:$0xf]
  %v81 = vld [vmem:[%s1 + $0x8] sm:$0xf]
  %v82 = vld [vmem:[%s1 + $0xc] sm:$0xf]
  %v83 = vld [vmem:[%s2] sm:$0x1]
  %v85 = vlaneseq
  %v86 = vshrl.u32 %v85, 7
  %v87 = vsub.s32 0, %v86
  %v88 = vrot.slane %v83, %v87
  %v154 = vunpack.c.l.b16 %v15
  %v155 = vunpack.c.l.b16 %v16
  %v156 = vunpack.c.l.b16 %v17
  %v157 = vunpack.c.l.b16 %v18
  %v158 = vunpack.c.l.b16 %v19
  %v159 = vunpack.c.l.b16 %v20
  %v160 = vunpack.c.l.b16 %v21
  %v161 = vunpack.c.l.b16 %v22
  %v162 = vunpack.c.l.b16 %v23
  %v163 = vunpack.c.l.b16 %v24
  %v164 = vunpack.c.l.b16 %v25
  %v165 = vunpack.c.l.b16 %v26
  %v166 = vunpack.c.l.b16 %v27
  %v167 = vunpack.c.l.b16 %v28
  %v168 = vunpack.c.l.b16 %v29
  %v169 = vunpack.c.l.b16 %v30
  %v170 = vunpack.c.l.b16 %v31
  %v171 = vunpack.c.l.b16 %v32
  %v172 = vunpack.c.l.b16 %v33
  %v173 = vunpack.c.l.b16 %v34
  %v174 = vunpack.c.l.b16 %v35
  %v175 = vunpack.c.l.b16 %v36
  %v176 = vunpack.c.l.b16 %v37
  %v177 = vunpack.c.l.b16 %v38
  %v178 = vunpack.c.l.b16 %v39
  %v179 = vunpack.c.l.b16 %v40
  %v180 = vunpack.c.l.b16 %v41
  %v181 = vunpack.c.l.b16 %v42
  %v182 = vunpack.c.l.b16 %v43
  %v183 = vunpack.c.l.b16 %v44
  %v184 = vunpack.c.l.b16 %v45
  %v185 = vunpack.c.l.b16 %v46
  %v186 = vunpack.c.l.b16 %v47
  %v187 = vunpack.c.l.b16 %v48
  %v188 = vunpack.c.l.b16 %v49
  %v189 = vunpack.c.l.b16 %v50
  %v190 = vunpack.c.l.b16 %v51
  %v191 = vunpack.c.l.b16 %v52
  %v192 = vunpack.c.l.b16 %v53
  %v193 = vunpack.c.l.b16 %v54
  %v194 = vunpack.c.l.b16 %v55
  %v195 = vunpack.c.l.b16 %v56
  %v196 = vunpack.c.l.b16 %v57
  %v197 = vunpack.c.l.b16 %v58
  %v198 = vunpack.c.l.b16 %v59
  %v199 = vunpack.c.l.b16 %v60
  %v200 = vunpack.c.l.b16 %v61
  %v201 = vunpack.c.l.b16 %v62
  %v202 = vunpack.c.l.b16 %v63
  %v203 = vunpack.c.l.b16 %v64
  %v204 = vunpack.c.l.b16 %v65
  %v205 = vunpack.c.l.b16 %v66
  %v206 = vunpack.c.l.b16 %v67
  %v207 = vunpack.c.l.b16 %v68
  %v208 = vunpack.c.l.b16 %v69
  %v209 = vunpack.c.l.b16 %v70
  %v210 = vunpack.c.l.b16 %v71
  %v211 = vunpack.c.l.b16 %v72
  %v212 = vunpack.c.l.b16 %v73
  %v213 = vunpack.c.l.b16 %v74
  %v214 = vunpack.c.l.b16 %v75
  %v215 = vunpack.c.l.b16 %v76
  %v216 = vunpack.c.l.b16 %v77
  %v217 = vunpack.c.l.b16 %v78
  %v218 = vpack.c.b16 %v155, %v154
  %v219 = vpack.c.b16 %v157, %v156
  %v220 = vpack.c.b16 %v159, %v158
  %v221 = vpack.c.b16 %v161, %v160
  %v222 = vpack.c.b16 %v163, %v162
  %v223 = vpack.c.b16 %v165, %v164
  %v224 = vpack.c.b16 %v167, %v166
  %v225 = vpack.c.b16 %v169, %v168
  %v226 = vpack.c.b16 %v171, %v170
  %v227 = vpack.c.b16 %v173, %v172
  %v228 = vpack.c.b16 %v175, %v174
  %v229 = vpack.c.b16 %v177, %v176
  %v230 = vpack.c.b16 %v179, %v178
  %v231 = vpack.c.b16 %v181, %v180
  %v232 = vpack.c.b16 %v183, %v182
  %v233 = vpack.c.b16 %v185, %v184
  %v234 = vpack.c.b16 %v187, %v186
  %v235 = vpack.c.b16 %v189, %v188
  %v236 = vpack.c.b16 %v191, %v190
  %v237 = vpack.c.b16 %v193, %v192
  %v238 = vpack.c.b16 %v195, %v194
  %v239 = vpack.c.b16 %v197, %v196
  %v240 = vpack.c.b16 %v199, %v198
  %v241 = vpack.c.b16 %v201, %v200
  %v242 = vpack.c.b16 %v203, %v202
  %v243 = vpack.c.b16 %v205, %v204
  %v244 = vpack.c.b16 %v207, %v206
  %v245 = vpack.c.b16 %v209, %v208
  %v246 = vpack.c.b16 %v211, %v210
  %v247 = vpack.c.b16 %v213, %v212
  %v248 = vpack.c.b16 %v215, %v214
  %v249 = vpack.c.b16 %v217, %v216
  %v254 = vunpack.c.l.b16 %v79
  %v255 = vunpack.c.l.b16 %v80
  %v256 = vunpack.c.l.b16 %v81
  %v257 = vunpack.c.l.b16 %v82
  %v258 = vpack.c.b16 %v255, %v254
  %v259 = vpack.c.b16 %v257, %v256
  %vm262 = vcmask 261120
  %v264 = vsel %vm262, %v218, 0
  %v267 = vsel %vm262, %v219, 0
  %v270 = vsel %vm262, %v220, 0
  %v273 = vsel %vm262, %v221, 0
  %v276 = vsel %vm262, %v222, 0
  %v279 = vsel %vm262, %v223, 0
  %v282 = vsel %vm262, %v224, 0
  %v285 = vsel %vm262, %v225, 0
  %v288 = vsel %vm262, %v226, 0
  %v291 = vsel %vm262, %v227, 0
  %v294 = vsel %vm262, %v228, 0
  %v297 = vsel %vm262, %v229, 0
  %v300 = vsel %vm262, %v230, 0
  %v303 = vsel %vm262, %v231, 0
  %v306 = vsel %vm262, %v232, 0
  %v309 = vsel %vm262, %v233, 0
  %v312 = vsel %vm262, %v234, 0
  %v315 = vsel %vm262, %v235, 0
  %v318 = vsel %vm262, %v236, 0
  %v321 = vsel %vm262, %v237, 0
  %v324 = vsel %vm262, %v238, 0
  %v327 = vsel %vm262, %v239, 0
  %v330 = vsel %vm262, %v240, 0
  %v333 = vsel %vm262, %v241, 0
  %v336 = vsel %vm262, %v242, 0
  %v339 = vsel %vm262, %v243, 0
  %v342 = vsel %vm262, %v244, 0
  %v345 = vsel %vm262, %v245, 0
  %v348 = vsel %vm262, %v246, 0
  %v351 = vsel %vm262, %v247, 0
  %v354 = vsel %vm262, %v248, 0
  %v357 = vsel %vm262, %v249, 0
  %359 = vmatprep.subr.bf16.mxu0 0
  %360 = vmatpush1.bf16.msra.mxu0 %v258
  %361 = vmatprep.subr.bf16.mxu0 0
  %362 = vmatpush1.bf16.msra.mxu0 %v259
  %363 = vmatprep.subr.bf16.mxu0 0
  %364 = vmatpush1.bf16.msra.mxu0 0
  %365 = vmatprep.subr.bf16.mxu0 0
  %366 = vmatpush1.bf16.msra.mxu0 0
  %367 = vmatprep.subr.bf16.mxu0 0
  %368 = vmatpush1.bf16.msra.mxu0 0
  %369 = vmatprep.subr.bf16.mxu0 0
  %370 = vmatpush1.bf16.msra.mxu0 0
  %371 = vmatprep.subr.bf16.mxu0 0
  %372 = vmatpush1.bf16.msra.mxu0 0
  %373 = vmatprep.subr.bf16.mxu0 0
  %374 = vmatpush1.bf16.msra.mxu0 0
  %375 = vmatprep.subr.bf16.mxu0 0
  %376 = vmatpush1.bf16.msra.mxu0 0
  %377 = vmatprep.subr.bf16.mxu0 0
  %378 = vmatpush1.bf16.msra.mxu0 0
  %379 = vmatprep.subr.bf16.mxu0 0
  %380 = vmatpush1.bf16.msra.mxu0 0
  %381 = vmatprep.subr.bf16.mxu0 0
  %382 = vmatpush1.bf16.msra.mxu0 0
  %383 = vmatprep.subr.bf16.mxu0 0
  %384 = vmatpush1.bf16.msra.mxu0 0
  %385 = vmatprep.subr.bf16.mxu0 0
  %386 = vmatpush1.bf16.msra.mxu0 0
  %387 = vmatprep.subr.bf16.mxu0 0
  %388 = vmatpush1.bf16.msra.mxu0 0
  %389 = vmatprep.subr.bf16.mxu0 0
  %390 = vmatpush1.bf16.msra.mxu0 0
  %391 = vmatprep.mubr.bf16.mxu0 0
  %392 = vmatmul.mubr.bf16.gmra.mrb[0].mxu0 %v264
  %v393 = vpop.f32.mrb[0].mxu0
  %v394 = vadd.f32 %v88, %v393
  %v395 = vpop.f32.mrb[0].mxu0
  %v396 = vpop.f32.mrb[0].mxu0
  %v397 = vadd.f32 %v88, %v396
  %v398 = vpop.f32.mrb[0].mxu0
  %399 = vmatprep.mubr.bf16.mxu0 0
  %400 = vmatmul.mubr.bf16.gmra.mrb[0].mxu0 %v267
  %v401 = vpop.f32.mrb[0].mxu0
  %v402 = vadd.f32 %v88, %v401
  %v403 = vpop.f32.mrb[0].mxu0
  %v404 = vpop.f32.mrb[0].mxu0
  %v405 = vadd.f32 %v88, %v404
  %v406 = vpop.f32.mrb[0].mxu0
  %407 = vmatprep.mubr.bf16.mxu0 0
  %408 = vmatmul.mubr.bf16.gmra.mrb[0].mxu0 %v270
  %v409 = vpop.f32.mrb[0].mxu0
  %v410 = vadd.f32 %v88, %v409
  %v411 = vpop.f32.mrb[0].mxu0
  %v412 = vpop.f32.mrb[0].mxu0
  %v413 = vadd.f32 %v88, %v412
  %v414 = vpop.f32.mrb[0].mxu0
  %415 = vmatprep.mubr.bf16.mxu0 0
  %416 = vmatmul.mubr.bf16.gmra.mrb[0].mxu0 %v273
  %v417 = vpop.f32.mrb[0].mxu0
  %v418 = vadd.f32 %v88, %v417
  %v419 = vpop.f32.mrb[0].mxu0
  %v420 = vpop.f32.mrb[0].mxu0
  %v421 = vadd.f32 %v88, %v420
  %v422 = vpop.f32.mrb[0].mxu0
  %423 = vmatprep.mubr.bf16.mxu0 0
  %424 = vmatmul.mubr.bf16.gmra.mrb[0].mxu0 %v276
  %v425 = vpop.f32.mrb[0].mxu0
  %v426 = vadd.f32 %v88, %v425
  %v427 = vpop.f32.mrb[0].mxu0
  %v428 = vpop.f32.mrb[0].mxu0
  %v429 = vadd.f32 %v88, %v428
  %v430 = vpop.f32.mrb[0].mxu0
  %431 = vmatprep.mubr.bf16.mxu0 0
  %432 = vmatmul.mubr.bf16.gmra.mrb[0].mxu0 %v279
  %v433 = vpop.f32.mrb[0].mxu0
  %v434 = vadd.f32 %v88, %v433
  %v435 = vpop.f32.mrb[0].mxu0
  %v436 = vpop.f32.mrb[0].mxu0
  %v437 = vadd.f32 %v88, %v436
  %v438 = vpop.f32.mrb[0].mxu0
  %439 = vmatprep.mubr.bf16.mxu0 0
  %440 = vmatmul.mubr.bf16.gmra.mrb[0].mxu0 %v282
  %v441 = vpop.f32.mrb[0].mxu0
  %v442 = vadd.f32 %v88, %v441
  %v443 = vpop.f32.mrb[0].mxu0
  %v444 = vpop.f32.mrb[0].mxu0
  %v445 = vadd.f32 %v88, %v444
  %v446 = vpop.f32.mrb[0].mxu0
  %447 = vmatprep.mubr.bf16.mxu0 0
  %448 = vmatmul.mubr.bf16.gmra.mrb[0].mxu0 %v285
  %v449 = vpop.f32.mrb[0].mxu0
  %v450 = vadd.f32 %v88, %v449
  %v451 = vpop.f32.mrb[0].mxu0
  %v452 = vpop.f32.mrb[0].mxu0
  %v453 = vadd.f32 %v88, %v452
  %v454 = vpop.f32.mrb[0].mxu0
  %455 = vmatprep.mubr.bf16.mxu0 0
  %456 = vmatmul.mubr.bf16.gmra.mrb[0].mxu0 %v288
  %v457 = vpop.f32.mrb[0].mxu0
  %v458 = vadd.f32 %v88, %v457
  %v459 = vpop.f32.mrb[0].mxu0
  %v460 = vpop.f32.mrb[0].mxu0
  %v461 = vadd.f32 %v88, %v460
  %v462 = vpop.f32.mrb[0].mxu0
  %463 = vmatprep.mubr.bf16.mxu0 0
  %464 = vmatmul.mubr.bf16.gmra.mrb[0].mxu0 %v291
  %v465 = vpop.f32.mrb[0].mxu0
  %v466 = vadd.f32 %v88, %v465
  %v467 = vpop.f32.mrb[0].mxu0
  %v468 = vpop.f32.mrb[0].mxu0
  %v469 = vadd.f32 %v88, %v468
  %v470 = vpop.f32.mrb[0].mxu0
  %471 = vmatprep.mubr.bf16.mxu0 0
  %472 = vmatmul.mubr.bf16.gmra.mrb[0].mxu0 %v294
  %v473 = vpop.f32.mrb[0].mxu0
  %v474 = vadd.f32 %v88, %v473
  %v475 = vpop.f32.mrb[0].mxu0
  %v476 = vpop.f32.mrb[0].mxu0
  %v477 = vadd.f32 %v88, %v476
  %v478 = vpop.f32.mrb[0].mxu0
  %479 = vmatprep.mubr.bf16.mxu0 0
  %480 = vmatmul.mubr.bf16.gmra.mrb[0].mxu0 %v297
  %v481 = vpop.f32.mrb[0].mxu0
  %v482 = vadd.f32 %v88, %v481
  %v483 = vpop.f32.mrb[0].mxu0
  %v484 = vpop.f32.mrb[0].mxu0
  %v485 = vadd.f32 %v88, %v484
  %v486 = vpop.f32.mrb[0].mxu0
  %487 = vmatprep.mubr.bf16.mxu0 0
  %488 = vmatmul.mubr.bf16.gmra.mrb[0].mxu0 %v300
  %v489 = vpop.f32.mrb[0].mxu0
  %v490 = vadd.f32 %v88, %v489
  %v491 = vpop.f32.mrb[0].mxu0
  %v492 = vpop.f32.mrb[0].mxu0
  %v493 = vadd.f32 %v88, %v492
  %v494 = vpop.f32.mrb[0].mxu0
  %495 = vmatprep.mubr.bf16.mxu0 0
  %496 = vmatmul.mubr.bf16.gmra.mrb[0].mxu0 %v303
  %v497 = vpop.f32.mrb[0].mxu0
  %v498 = vadd.f32 %v88, %v497
  %v499 = vpop.f32.mrb[0].mxu0
  %v500 = vpop.f32.mrb[0].mxu0
  %v501 = vadd.f32 %v88, %v500
  %v502 = vpop.f32.mrb[0].mxu0
  %503 = vmatprep.mubr.bf16.mxu0 0
  %504 = vmatmul.mubr.bf16.gmra.mrb[0].mxu0 %v306
  %v505 = vpop.f32.mrb[0].mxu0
  %v506 = vadd.f32 %v88, %v505
  %v507 = vpop.f32.mrb[0].mxu0
  %v508 = vpop.f32.mrb[0].mxu0
  %v509 = vadd.f32 %v88, %v508
  %v510 = vpop.f32.mrb[0].mxu0
  %511 = vmatprep.mubr.bf16.mxu0 0
  %512 = vmatmul.mubr.bf16.gmra.mrb[0].mxu0 %v309
  %v513 = vpop.f32.mrb[0].mxu0
  %v514 = vadd.f32 %v88, %v513
  %v515 = vpop.f32.mrb[0].mxu0
  %v516 = vpop.f32.mrb[0].mxu0
  %v517 = vadd.f32 %v88, %v516
  %v518 = vpop.f32.mrb[0].mxu0
  %519 = vmatprep.mubr.bf16.mxu0 0
  %520 = vmatmul.mubr.bf16.gmra.mrb[0].mxu0 %v312
  %v521 = vpop.f32.mrb[0].mxu0
  %v522 = vadd.f32 %v88, %v521
  %v523 = vpop.f32.mrb[0].mxu0
  %v524 = vpop.f32.mrb[0].mxu0
  %v525 = vadd.f32 %v88, %v524
  %v526 = vpop.f32.mrb[0].mxu0
  %527 = vmatprep.mubr.bf16.mxu0 0
  %528 = vmatmul.mubr.bf16.gmra.mrb[0].mxu0 %v315
  %v529 = vpop.f32.mrb[0].mxu0
  %v530 = vadd.f32 %v88, %v529
  %v531 = vpop.f32.mrb[0].mxu0
  %v532 = vpop.f32.mrb[0].mxu0
  %v533 = vadd.f32 %v88, %v532
  %v534 = vpop.f32.mrb[0].mxu0
  %535 = vmatprep.mubr.bf16.mxu0 0
  %536 = vmatmul.mubr.bf16.gmra.mrb[0].mxu0 %v318
  %v537 = vpop.f32.mrb[0].mxu0
  %v538 = vadd.f32 %v88, %v537
  %v539 = vpop.f32.mrb[0].mxu0
  %v540 = vpop.f32.mrb[0].mxu0
  %v541 = vadd.f32 %v88, %v540
  %v542 = vpop.f32.mrb[0].mxu0
  %543 = vmatprep.mubr.bf16.mxu0 0
  %544 = vmatmul.mubr.bf16.gmra.mrb[0].mxu0 %v321
  %v545 = vpop.f32.mrb[0].mxu0
  %v546 = vadd.f32 %v88, %v545
  %v547 = vpop.f32.mrb[0].mxu0
  %v548 = vpop.f32.mrb[0].mxu0
  %v549 = vadd.f32 %v88, %v548
  %v550 = vpop.f32.mrb[0].mxu0
  %551 = vmatprep.mubr.bf16.mxu0 0
  %552 = vmatmul.mubr.bf16.gmra.mrb[0].mxu0 %v324
  %v553 = vpop.f32.mrb[0].mxu0
  %v554 = vadd.f32 %v88, %v553
  %v555 = vpop.f32.mrb[0].mxu0
  %v556 = vpop.f32.mrb[0].mxu0
  %v557 = vadd.f32 %v88, %v556
  %v558 = vpop.f32.mrb[0].mxu0
  %559 = vmatprep.mubr.bf16.mxu0 0
  %560 = vmatmul.mubr.bf16.gmra.mrb[0].mxu0 %v327
  %v561 = vpop.f32.mrb[0].mxu0
  %v562 = vadd.f32 %v88, %v561
  %v563 = vpop.f32.mrb[0].mxu0
  %v564 = vpop.f32.mrb[0].mxu0
  %v565 = vadd.f32 %v88, %v564
  %v566 = vpop.f32.mrb[0].mxu0
  %567 = vmatprep.mubr.bf16.mxu0 0
  %568 = vmatmul.mubr.bf16.gmra.mrb[0].mxu0 %v330
  %v569 = vpop.f32.mrb[0].mxu0
  %v570 = vadd.f32 %v88, %v569
  %v571 = vpop.f32.mrb[0].mxu0
  %v572 = vpop.f32.mrb[0].mxu0
  %v573 = vadd.f32 %v88, %v572
  %v574 = vpop.f32.mrb[0].mxu0
  %575 = vmatprep.mubr.bf16.mxu0 0
  %576 = vmatmul.mubr.bf16.gmra.mrb[0].mxu0 %v333
  %v577 = vpop.f32.mrb[0].mxu0
  %v578 = vadd.f32 %v88, %v577
  %v579 = vpop.f32.mrb[0].mxu0
  %v580 = vpop.f32.mrb[0].mxu0
  %v581 = vadd.f32 %v88, %v580
  %v582 = vpop.f32.mrb[0].mxu0
  %583 = vmatprep.mubr.bf16.mxu0 0
  %584 = vmatmul.mubr.bf16.gmra.mrb[0].mxu0 %v336
  %v585 = vpop.f32.mrb[0].mxu0
  %v586 = vadd.f32 %v88, %v585
  %v587 = vpop.f32.mrb[0].mxu0
  %v588 = vpop.f32.mrb[0].mxu0
  %v589 = vadd.f32 %v88, %v588
  %v590 = vpop.f32.mrb[0].mxu0
  %591 = vmatprep.mubr.bf16.mxu0 0
  %592 = vmatmul.mubr.bf16.gmra.mrb[0].mxu0 %v339
  %v593 = vpop.f32.mrb[0].mxu0
  %v594 = vadd.f32 %v88, %v593
  %v595 = vpop.f32.mrb[0].mxu0
  %v596 = vpop.f32.mrb[0].mxu0
  %v597 = vadd.f32 %v88, %v596
  %v598 = vpop.f32.mrb[0].mxu0
  %599 = vmatprep.mubr.bf16.mxu0 0
  %600 = vmatmul.mubr.bf16.gmra.mrb[0].mxu0 %v342
  %v601 = vpop.f32.mrb[0].mxu0
  %v602 = vadd.f32 %v88, %v601
  %v603 = vpop.f32.mrb[0].mxu0
  %v604 = vpop.f32.mrb[0].mxu0
  %v605 = vadd.f32 %v88, %v604
  %v606 = vpop.f32.mrb[0].mxu0
  %607 = vmatprep.mubr.bf16.mxu0 0
  %608 = vmatmul.mubr.bf16.gmra.mrb[0].mxu0 %v345
  %v609 = vpop.f32.mrb[0].mxu0
  %v610 = vadd.f32 %v88, %v609
  %v611 = vpop.f32.mrb[0].mxu0
  %v612 = vpop.f32.mrb[0].mxu0
  %v613 = vadd.f32 %v88, %v612
  %v614 = vpop.f32.mrb[0].mxu0
  %615 = vmatprep.mubr.bf16.mxu0 0
  %616 = vmatmul.mubr.bf16.gmra.mrb[0].mxu0 %v348
  %v617 = vpop.f32.mrb[0].mxu0
  %v618 = vadd.f32 %v88, %v617
  %v619 = vpop.f32.mrb[0].mxu0
  %v620 = vpop.f32.mrb[0].mxu0
  %v621 = vadd.f32 %v88, %v620
  %v622 = vpop.f32.mrb[0].mxu0
  %623 = vmatprep.mubr.bf16.mxu0 0
  %624 = vmatmul.mubr.bf16.gmra.mrb[0].mxu0 %v351
  %v625 = vpop.f32.mrb[0].mxu0
  %v626 = vadd.f32 %v88, %v625
  %v627 = vpop.f32.mrb[0].mxu0
  %v628 = vpop.f32.mrb[0].mxu0
  %v629 = vadd.f32 %v88, %v628
  %v630 = vpop.f32.mrb[0].mxu0
  %631 = vmatprep.mubr.bf16.mxu0 0
  %632 = vmatmul.mubr.bf16.gmra.mrb[0].mxu0 %v354
  %v633 = vpop.f32.mrb[0].mxu0
  %v634 = vadd.f32 %v88, %v633
  %v635 = vpop.f32.mrb[0].mxu0
  %v636 = vpop.f32.mrb[0].mxu0
  %v637 = vadd.f32 %v88, %v636
  %v638 = vpop.f32.mrb[0].mxu0
  %639 = vmatprep.mubr.bf16.mxu0 0
  %640 = vmatmul.mubr.bf16.gmra.mrb[0].mxu0 %v357
  %v641 = vpop.f32.mrb[0].mxu0
  %v642 = vadd.f32 %v88, %v641
  %v643 = vpop.f32.mrb[0].mxu0
  %v644 = vpop.f32.mrb[0].mxu0
  %v645 = vadd.f32 %v88, %v644
  %v646 = vpop.f32.mrb[0].mxu0
  %647 = vdwg.mxu0
  %v648 = vtanh.pop %v394
  %v649 = vtanh.pop %v397
  %v650 = vtanh.pop %v402
  %v651 = vtanh.pop %v405
  %v652 = vtanh.pop %v410
  %v653 = vtanh.pop %v413
  %v654 = vtanh.pop %v418
  %v655 = vtanh.pop %v421
  %v656 = vtanh.pop %v426
  %v657 = vtanh.pop %v429
  %v658 = vtanh.pop %v434
  %v659 = vtanh.pop %v437
  %v660 = vtanh.pop %v442
  %v661 = vtanh.pop %v445
  %v662 = vtanh.pop %v450
  %v663 = vtanh.pop %v453
  %v664 = vtanh.pop %v458
  %v665 = vtanh.pop %v461
  %v666 = vtanh.pop %v466
  %v667 = vtanh.pop %v469
  %v668 = vtanh.pop %v474
  %v669 = vtanh.pop %v477
  %v670 = vtanh.pop %v482
  %v671 = vtanh.pop %v485
  %v672 = vtanh.pop %v490
  %v673 = vtanh.pop %v493
  %v674 = vtanh.pop %v498
  %v675 = vtanh.pop %v501
  %v676 = vtanh.pop %v506
  %v677 = vtanh.pop %v509
  %v678 = vtanh.pop %v514
  %v679 = vtanh.pop %v517
  %v680 = vtanh.pop %v522
  %v681 = vtanh.pop %v525
  %v682 = vtanh.pop %v530
  %v683 = vtanh.pop %v533
  %v684 = vtanh.pop %v538
  %v685 = vtanh.pop %v541
  %v686 = vtanh.pop %v546
  %v687 = vtanh.pop %v549
  %v688 = vtanh.pop %v554
  %v689 = vtanh.pop %v557
  %v690 = vtanh.pop %v562
  %v691 = vtanh.pop %v565
  %v692 = vtanh.pop %v570
  %v693 = vtanh.pop %v573
  %v694 = vtanh.pop %v578
  %v695 = vtanh.pop %v581
  %v696 = vtanh.pop %v586
  %v697 = vtanh.pop %v589
  %v698 = vtanh.pop %v594
  %v699 = vtanh.pop %v597
  %v700 = vtanh.pop %v602
  %v701 = vtanh.pop %v605
  %v702 = vtanh.pop %v610
  %v703 = vtanh.pop %v613
  %v704 = vtanh.pop %v618
  %v705 = vtanh.pop %v621
  %v706 = vtanh.pop %v626
  %v707 = vtanh.pop %v629
  %v708 = vtanh.pop %v634
  %v709 = vtanh.pop %v637
  %v710 = vtanh.pop %v642
  %v711 = vtanh.pop %v645
  %v712 = vmul.f32 %v394, %v648
  %v713 = vmul.f32 %v397, %v649
  %v714 = vmul.f32 %v402, %v650
  %v715 = vmul.f32 %v405, %v651
  %v716 = vmul.f32 %v410, %v652
  %v717 = vmul.f32 %v413, %v653
  %v718 = vmul.f32 %v418, %v654
  %v719 = vmul.f32 %v421, %v655
  %v720 = vmul.f32 %v426, %v656
  %v721 = vmul.f32 %v429, %v657
  %v722 = vmul.f32 %v434, %v658
  %v723 = vmul.f32 %v437, %v659
  %v724 = vmul.f32 %v442, %v660
  %v725 = vmul.f32 %v445, %v661
  %v726 = vmul.f32 %v450, %v662
  %v727 = vmul.f32 %v453, %v663
  %v728 = vmul.f32 %v458, %v664
  %v729 = vmul.f32 %v461, %v665
  %v730 = vmul.f32 %v466, %v666
  %v731 = vmul.f32 %v469, %v667
  %v732 = vmul.f32 %v474, %v668
  %v733 = vmul.f32 %v477, %v669
  %v734 = vmul.f32 %v482, %v670
  %v735 = vmul.f32 %v485, %v671
  %v736 = vmul.f32 %v490, %v672
  %v737 = vmul.f32 %v493, %v673
  %v738 = vmul.f32 %v498, %v674
  %v739 = vmul.f32 %v501, %v675
  %v740 = vmul.f32 %v506, %v676
  %v741 = vmul.f32 %v509, %v677
  %v742 = vmul.f32 %v514, %v678
  %v743 = vmul.f32 %v517, %v679
  %v744 = vmul.f32 %v522, %v680
  %v745 = vmul.f32 %v525, %v681
  %v746 = vmul.f32 %v530, %v682
  %v747 = vmul.f32 %v533, %v683
  %v748 = vmul.f32 %v538, %v684
  %v749 = vmul.f32 %v541, %v685
  %v750 = vmul.f32 %v546, %v686
  %v751 = vmul.f32 %v549, %v687
  %v752 = vmul.f32 %v554, %v688
  %v753 = vmul.f32 %v557, %v689
  %v754 = vmul.f32 %v562, %v690
  %v755 = vmul.f32 %v565, %v691
  %v756 = vmul.f32 %v570, %v692
  %v757 = vmul.f32 %v573, %v693
  %v758 = vmul.f32 %v578, %v694
  %v759 = vmul.f32 %v581, %v695
  %v760 = vmul.f32 %v586, %v696
  %v761 = vmul.f32 %v589, %v697
  %v762 = vmul.f32 %v594, %v698
  %v763 = vmul.f32 %v597, %v699
  %v764 = vmul.f32 %v602, %v700
  %v765 = vmul.f32 %v605, %v701
  %v766 = vmul.f32 %v610, %v702
  %v767 = vmul.f32 %v613, %v703
  %v768 = vmul.f32 %v618, %v704
  %v769 = vmul.f32 %v621, %v705
  %v770 = vmul.f32 %v626, %v706
  %v771 = vmul.f32 %v629, %v707
  %v772 = vmul.f32 %v634, %v708
  %v773 = vmul.f32 %v637, %v709
  %v774 = vmul.f32 %v642, %v710
  %v775 = vmul.f32 %v645, %v711
  %v776 = vadd.f32 %v712, %v394
  %v777 = vadd.f32 %v713, %v397
  %v778 = vadd.f32 %v714, %v402
  %v779 = vadd.f32 %v715, %v405
  %v780 = vadd.f32 %v716, %v410
  %v781 = vadd.f32 %v717, %v413
  %v782 = vadd.f32 %v718, %v418
  %v783 = vadd.f32 %v719, %v421
  %v784 = vadd.f32 %v720, %v426
  %v785 = vadd.f32 %v721, %v429
  %v786 = vadd.f32 %v722, %v434
  %v787 = vadd.f32 %v723, %v437
  %v788 = vadd.f32 %v724, %v442
  %v789 = vadd.f32 %v725, %v445
  %v790 = vadd.f32 %v726, %v450
  %v791 = vadd.f32 %v727, %v453
  %v792 = vadd.f32 %v728, %v458
  %v793 = vadd.f32 %v729, %v461
  %v794 = vadd.f32 %v730, %v466
  %v795 = vadd.f32 %v731, %v469
  %v796 = vadd.f32 %v732, %v474
  %v797 = vadd.f32 %v733, %v477
  %v798 = vadd.f32 %v734, %v482
  %v799 = vadd.f32 %v735, %v485
  %v800 = vadd.f32 %v736, %v490
  %v801 = vadd.f32 %v737, %v493
  %v802 = vadd.f32 %v738, %v498
  %v803 = vadd.f32 %v739, %v501
  %v804 = vadd.f32 %v740, %v506
  %v805 = vadd.f32 %v741, %v509
  %v806 = vadd.f32 %v742, %v514
  %v807 = vadd.f32 %v743, %v517
  %v808 = vadd.f32 %v744, %v522
  %v809 = vadd.f32 %v745, %v525
  %v810 = vadd.f32 %v746, %v530
  %v811 = vadd.f32 %v747, %v533
  %v812 = vadd.f32 %v748, %v538
  %v813 = vadd.f32 %v749, %v541
  %v814 = vadd.f32 %v750, %v546
  %v815 = vadd.f32 %v751, %v549
  %v816 = vadd.f32 %v752, %v554
  %v817 = vadd.f32 %v753, %v557
  %v818 = vadd.f32 %v754, %v562
  %v819 = vadd.f32 %v755, %v565
  %v820 = vadd.f32 %v756, %v570
  %v821 = vadd.f32 %v757, %v573
  %v822 = vadd.f32 %v758, %v578
  %v823 = vadd.f32 %v759, %v581
  %v824 = vadd.f32 %v760, %v586
  %v825 = vadd.f32 %v761, %v589
  %v826 = vadd.f32 %v762, %v594
  %v827 = vadd.f32 %v763, %v597
  %v828 = vadd.f32 %v764, %v602
  %v829 = vadd.f32 %v765, %v605
  %v830 = vadd.f32 %v766, %v610
  %v831 = vadd.f32 %v767, %v613
  %v832 = vadd.f32 %v768, %v618
  %v833 = vadd.f32 %v769, %v621
  %v834 = vadd.f32 %v770, %v626
  %v835 = vadd.f32 %v771, %v629
  %v836 = vadd.f32 %v772, %v634
  %v837 = vadd.f32 %v773, %v637
  %v838 = vadd.f32 %v774, %v642
  %v839 = vadd.f32 %v775, %v645
  %v840 = vpack.c.bf16 %v777, %v776
  %v841 = vpack.c.bf16 %v779, %v778
  %v842 = vpack.c.bf16 %v781, %v780
  %v843 = vpack.c.bf16 %v783, %v782
  %v844 = vpack.c.bf16 %v785, %v784
  %v845 = vpack.c.bf16 %v787, %v786
  %v846 = vpack.c.bf16 %v789, %v788
  %v847 = vpack.c.bf16 %v791, %v790
  %v848 = vpack.c.bf16 %v793, %v792
  %v849 = vpack.c.bf16 %v795, %v794
  %v850 = vpack.c.bf16 %v797, %v796
  %v851 = vpack.c.bf16 %v799, %v798
  %v852 = vpack.c.bf16 %v801, %v800
  %v853 = vpack.c.bf16 %v803, %v802
  %v854 = vpack.c.bf16 %v805, %v804
  %v855 = vpack.c.bf16 %v807, %v806
  %v856 = vpack.c.bf16 %v809, %v808
  %v857 = vpack.c.bf16 %v811, %v810
  %v858 = vpack.c.bf16 %v813, %v812
  %v859 = vpack.c.bf16 %v815, %v814
  %v860 = vpack.c.bf16 %v817, %v816
  %v861 = vpack.c.bf16 %v819, %v818
  %v862 = vpack.c.bf16 %v821, %v820
  %v863 = vpack.c.bf16 %v823, %v822
  %v864 = vpack.c.bf16 %v825, %v824
  %v865 = vpack.c.bf16 %v827, %v826
  %v866 = vpack.c.bf16 %v829, %v828
  %v867 = vpack.c.bf16 %v831, %v830
  %v868 = vpack.c.bf16 %v833, %v832
  %v869 = vpack.c.bf16 %v835, %v834
  %v870 = vpack.c.bf16 %v837, %v836
  %v871 = vpack.c.bf16 %v839, %v838
  %v904 = vunpack.c.l.b16 %v840
  %v905 = vunpack.c.h.b16 %v840
  %v906 = vunpack.c.l.b16 %v841
  %v907 = vunpack.c.h.b16 %v841
  %v908 = vunpack.c.l.b16 %v842
  %v909 = vunpack.c.h.b16 %v842
  %v910 = vunpack.c.l.b16 %v843
  %v911 = vunpack.c.h.b16 %v843
  %v912 = vunpack.c.l.b16 %v844
  %v913 = vunpack.c.h.b16 %v844
  %v914 = vunpack.c.l.b16 %v845
  %v915 = vunpack.c.h.b16 %v845
  %v916 = vunpack.c.l.b16 %v846
  %v917 = vunpack.c.h.b16 %v846
  %v918 = vunpack.c.l.b16 %v847
  %v919 = vunpack.c.h.b16 %v847
  %v920 = vunpack.c.l.b16 %v848
  %v921 = vunpack.c.h.b16 %v848
  %v922 = vunpack.c.l.b16 %v849
  %v923 = vunpack.c.h.b16 %v849
  %v924 = vunpack.c.l.b16 %v850
  %v925 = vunpack.c.h.b16 %v850
  %v926 = vunpack.c.l.b16 %v851
  %v927 = vunpack.c.h.b16 %v851
  %v928 = vunpack.c.l.b16 %v852
  %v929 = vunpack.c.h.b16 %v852
  %v930 = vunpack.c.l.b16 %v853
  %v931 = vunpack.c.h.b16 %v853
  %v932 = vunpack.c.l.b16 %v854
  %v933 = vunpack.c.h.b16 %v854
  %v934 = vunpack.c.l.b16 %v855
  %v935 = vunpack.c.h.b16 %v855
  %v936 = vunpack.c.l.b16 %v856
  %v937 = vunpack.c.h.b16 %v856
  %v938 = vunpack.c.l.b16 %v857
  %v939 = vunpack.c.h.b16 %v857
  %v940 = vunpack.c.l.b16 %v858
  %v941 = vunpack.c.h.b16 %v858
  %v942 = vunpack.c.l.b16 %v859
  %v943 = vunpack.c.h.b16 %v859
  %v944 = vunpack.c.l.b16 %v860
  %v945 = vunpack.c.h.b16 %v860
  %v946 = vunpack.c.l.b16 %v861
  %v947 = vunpack.c.h.b16 %v861
  %v948 = vunpack.c.l.b16 %v862
  %v949 = vunpack.c.h.b16 %v862
  %v950 = vunpack.c.l.b16 %v863
  %v951 = vunpack.c.h.b16 %v863
  %v952 = vunpack.c.l.b16 %v864
  %v953 = vunpack.c.h.b16 %v864
  %v954 = vunpack.c.l.b16 %v865
  %v955 = vunpack.c.h.b16 %v865
  %v956 = vunpack.c.l.b16 %v866
  %v957 = vunpack.c.h.b16 %v866
  %v958 = vunpack.c.l.b16 %v867
  %v959 = vunpack.c.h.b16 %v867
  %v960 = vunpack.c.l.b16 %v868
  %v961 = vunpack.c.h.b16 %v868
  %v962 = vunpack.c.l.b16 %v869
  %v963 = vunpack.c.h.b16 %v869
  %v964 = vunpack.c.l.b16 %v870
  %v965 = vunpack.c.h.b16 %v870
  %v966 = vunpack.c.l.b16 %v871
  %v967 = vunpack.c.h.b16 %v871
  %v968 = vpack.c.b16 %v904, %v904
  %v969 = vpack.c.b16 %v905, %v905
  %v970 = vpack.c.b16 %v906, %v906
  %v971 = vpack.c.b16 %v907, %v907
  %v972 = vpack.c.b16 %v908, %v908
  %v973 = vpack.c.b16 %v909, %v909
  %v974 = vpack.c.b16 %v910, %v910
  %v975 = vpack.c.b16 %v911, %v911
  %v976 = vpack.c.b16 %v912, %v912
  %v977 = vpack.c.b16 %v913, %v913
  %v978 = vpack.c.b16 %v914, %v914
  %v979 = vpack.c.b16 %v915, %v915
  %v980 = vpack.c.b16 %v916, %v916
  %v981 = vpack.c.b16 %v917, %v917
  %v982 = vpack.c.b16 %v918, %v918
  %v983 = vpack.c.b16 %v919, %v919
  %v984 = vpack.c.b16 %v920, %v920
  %v985 = vpack.c.b16 %v921, %v921
  %v986 = vpack.c.b16 %v922, %v922
  %v987 = vpack.c.b16 %v923, %v923
  %v988 = vpack.c.b16 %v924, %v924
  %v989 = vpack.c.b16 %v925, %v925
  %v990 = vpack.c.b16 %v926, %v926
  %v991 = vpack.c.b16 %v927, %v927
  %v992 = vpack.c.b16 %v928, %v928
  %v993 = vpack.c.b16 %v929, %v929
  %v994 = vpack.c.b16 %v930, %v930
  %v995 = vpack.c.b16 %v931, %v931
  %v996 = vpack.c.b16 %v932, %v932
  %v997 = vpack.c.b16 %v933, %v933
  %v998 = vpack.c.b16 %v934, %v934
  %v999 = vpack.c.b16 %v935, %v935
  %v1000 = vpack.c.b16 %v936, %v936
  %v1001 = vpack.c.b16 %v937, %v937
  %v1002 = vpack.c.b16 %v938, %v938
  %v1003 = vpack.c.b16 %v939, %v939
  %v1004 = vpack.c.b16 %v940, %v940
  %v1005 = vpack.c.b16 %v941, %v941
  %v1006 = vpack.c.b16 %v942, %v942
  %v1007 = vpack.c.b16 %v943, %v943
  %v1008 = vpack.c.b16 %v944, %v944
  %v1009 = vpack.c.b16 %v945, %v945
  %v1010 = vpack.c.b16 %v946, %v946
  %v1011 = vpack.c.b16 %v947, %v947
  %v1012 = vpack.c.b16 %v948, %v948
  %v1013 = vpack.c.b16 %v949, %v949
  %v1014 = vpack.c.b16 %v950, %v950
  %v1015 = vpack.c.b16 %v951, %v951
  %v1016 = vpack.c.b16 %v952, %v952
  %v1017 = vpack.c.b16 %v953, %v953
  %v1018 = vpack.c.b16 %v954, %v954
  %v1019 = vpack.c.b16 %v955, %v955
  %v1020 = vpack.c.b16 %v956, %v956
  %v1021 = vpack.c.b16 %v957, %v957
  %v1022 = vpack.c.b16 %v958, %v958
  %v1023 = vpack.c.b16 %v959, %v959
  %v1024 = vpack.c.b16 %v960, %v960
  %v1025 = vpack.c.b16 %v961, %v961
  %v1026 = vpack.c.b16 %v962, %v962
  %v1027 = vpack.c.b16 %v963, %v963
  %v1028 = vpack.c.b16 %v964, %v964
  %v1029 = vpack.c.b16 %v965, %v965
  %v1030 = vpack.c.b16 %v966, %v966
  %v1031 = vpack.c.b16 %v967, %v967
  %vm1096 = vcmask 257024
  %1097 = vst.msk [vmem:[%s3] sm:$0xf] %vm1096, %v968
  %1098 = vst.msk [vmem:[%s3 + $0x4] sm:$0xf] %vm1096, %v969
  %1099 = vst.msk [vmem:[%s3 + $0x8] sm:$0xf] %vm1096, %v970
  %1100 = vst.msk [vmem:[%s3 + $0xc] sm:$0xf] %vm1096, %v971
  %1101 = vst.msk [vmem:[%s3 + $0x10] sm:$0xf] %vm1096, %v972
  %1102 = vst.msk [vmem:[%s3 + $0x14] sm:$0xf] %vm1096, %v973
  %1103 = vst.msk [vmem:[%s3 + $0x18] sm:$0xf] %vm1096, %v974
  %1104 = vst.msk [vmem:[%s3 + $0x1c] sm:$0xf] %vm1096, %v975
  %1105 = vst.msk [vmem:[%s3 + $0x20] sm:$0xf] %vm1096, %v976
  %1106 = vst.msk [vmem:[%s3 + $0x24] sm:$0xf] %vm1096, %v977
  %1107 = vst.msk [vmem:[%s3 + $0x28] sm:$0xf] %vm1096, %v978
  %1108 = vst.msk [vmem:[%s3 + $0x2c] sm:$0xf] %vm1096, %v979
  %1109 = vst.msk [vmem:[%s3 + $0x30] sm:$0xf] %vm1096, %v980
  %1110 = vst.msk [vmem:[%s3 + $0x34] sm:$0xf] %vm1096, %v981
  %1111 = vst.msk [vmem:[%s3 + $0x38] sm:$0xf] %vm1096, %v982
  %1112 = vst.msk [vmem:[%s3 + $0x3c] sm:$0xf] %vm1096, %v983
  %1113 = vst.msk [vmem:[%s3 + $0x40] sm:$0xf] %vm1096, %v984
  %1114 = vst.msk [vmem:[%s3 + $0x44] sm:$0xf] %vm1096, %v985
  %1115 = vst.msk [vmem:[%s3 + $0x48] sm:$0xf] %vm1096, %v986
  %1116 = vst.msk [vmem:[%s3 + $0x4c] sm:$0xf] %vm1096, %v987
  %1117 = vst.msk [vmem:[%s3 + $0x50] sm:$0xf] %vm1096, %v988
  %1118 = vst.msk [vmem:[%s3 + $0x54] sm:$0xf] %vm1096, %v989
  %1119 = vst.msk [vmem:[%s3 + $0x58] sm:$0xf] %vm1096, %v990
  %1120 = vst.msk [vmem:[%s3 + $0x5c] sm:$0xf] %vm1096, %v991
  %1121 = vst.msk [vmem:[%s3 + $0x60] sm:$0xf] %vm1096, %v992
  %1122 = vst.msk [vmem:[%s3 + $0x64] sm:$0xf] %vm1096, %v993
  %1123 = vst.msk [vmem:[%s3 + $0x68] sm:$0xf] %vm1096, %v994
  %1124 = vst.msk [vmem:[%s3 + $0x6c] sm:$0xf] %vm1096, %v995
  %1125 = vst.msk [vmem:[%s3 + $0x70] sm:$0xf] %vm1096, %v996
  %1126 = vst.msk [vmem:[%s3 + $0x74] sm:$0xf] %vm1096, %v997
  %1127 = vst.msk [vmem:[%s3 + $0x78] sm:$0xf] %vm1096, %v998
  %1128 = vst.msk [vmem:[%s3 + $0x7c] sm:$0xf] %vm1096, %v999
  %1129 = vst.msk [vmem:[%s3 + $0x80] sm:$0xf] %vm1096, %v1000
  %1130 = vst.msk [vmem:[%s3 + $0x84] sm:$0xf] %vm1096, %v1001
  %1131 = vst.msk [vmem:[%s3 + $0x88] sm:$0xf] %vm1096, %v1002
  %1132 = vst.msk [vmem:[%s3 + $0x8c] sm:$0xf] %vm1096, %v1003
  %1133 = vst.msk [vmem:[%s3 + $0x90] sm:$0xf] %vm1096, %v1004
  %1134 = vst.msk [vmem:[%s3 + $0x94] sm:$0xf] %vm1096, %v1005
  %1135 = vst.msk [vmem:[%s3 + $0x98] sm:$0xf] %vm1096, %v1006
  %1136 = vst.msk [vmem:[%s3 + $0x9c] sm:$0xf] %vm1096, %v1007
  %1137 = vst.msk [vmem:[%s3 + $0xa0] sm:$0xf] %vm1096, %v1008
  %1138 = vst.msk [vmem:[%s3 + $0xa4] sm:$0xf] %vm1096, %v1009
  %1139 = vst.msk [vmem:[%s3 + $0xa8] sm:$0xf] %vm1096, %v1010
  %1140 = vst.msk [vmem:[%s3 + $0xac] sm:$0xf] %vm1096, %v1011
  %1141 = vst.msk [vmem:[%s3 + $0xb0] sm:$0xf] %vm1096, %v1012
  %1142 = vst.msk [vmem:[%s3 + $0xb4] sm:$0xf] %vm1096, %v1013
  %1143 = vst.msk [vmem:[%s3 + $0xb8] sm:$0xf] %vm1096, %v1014
  %1144 = vst.msk [vmem:[%s3 + $0xbc] sm:$0xf] %vm1096, %v1015
  %1145 = vst.msk [vmem:[%s3 + $0xc0] sm:$0xf] %vm1096, %v1016
  %1146 = vst.msk [vmem:[%s3 + $0xc4] sm:$0xf] %vm1096, %v1017
  %1147 = vst.msk [vmem:[%s3 + $0xc8] sm:$0xf] %vm1096, %v1018
  %1148 = vst.msk [vmem:[%s3 + $0xcc] sm:$0xf] %vm1096, %v1019
  %1149 = vst.msk [vmem:[%s3 + $0xd0] sm:$0xf] %vm1096, %v1020
  %1150 = vst.msk [vmem:[%s3 + $0xd4] sm:$0xf] %vm1096, %v1021
  %1151 = vst.msk [vmem:[%s3 + $0xd8] sm:$0xf] %vm1096, %v1022
  %1152 = vst.msk [vmem:[%s3 + $0xdc] sm:$0xf] %vm1096, %v1023
  %1153 = vst.msk [vmem:[%s3 + $0xe0] sm:$0xf] %vm1096, %v1024
  %1154 = vst.msk [vmem:[%s3 + $0xe4] sm:$0xf] %vm1096, %v1025
  %1155 = vst.msk [vmem:[%s3 + $0xe8] sm:$0xf] %vm1096, %v1026
  %1156 = vst.msk [vmem:[%s3 + $0xec] sm:$0xf] %vm1096, %v1027
  %1157 = vst.msk [vmem:[%s3 + $0xf0] sm:$0xf] %vm1096, %v1028
  %1158 = vst.msk [vmem:[%s3 + $0xf4] sm:$0xf] %vm1096, %v1029
  %1159 = vst.msk [vmem:[%s3 + $0xf8] sm:$0xf] %vm1096, %v1030
  %1160 = vst.msk [vmem:[%s3 + $0xfc] sm:$0xf] %vm1096, %v1031
  // Predicated region
  $region14: #{tpu_custom_call.1} parent=0 // pred_check
    _
  $region15: #{tpu_custom_call.1} parent=0 // pred_check_branch
    %1162 = sbr.rel (0) target = $region17
  $region16: #{tpu_custom_call.1} parent=0 // pred_region
    _
  $region17: #{tpu_custom_call.1} parent=0 // pred_fallthru
    _
  // Predicated region
  $region18: #{tpu_custom_call.1} parent=0 // pred_check
    _
  $region19: #{tpu_custom_call.1} parent=0 // pred_check_branch
    %1164 = sbr.rel (0) target = $region21
  $region20: #{tpu_custom_call.1} parent=0 // pred_region
    _
  $region21: #{tpu_custom_call.1} parent=0 // pred_fallthru
    _

</llo_original>
